<compile_context>
chip_gen: v7x
topology: tpu7x:2x2x1
jax: 0.10.0
libtpu: 0.0.40
codegen_flags: <defaults>
</compile_context>

<pallas_src>
import math

import jax
import jax.numpy as jnp
from jax.experimental import pallas as pl
from jax.experimental.pallas import tpu as pltpu


def _round_up(x: int, m: int) -> int:
    return ((x + m - 1) // m) * m


def _input_embedding_kernel(ids_ref, w_ref, o_ref):
    """One grid step: embed TB tokens.

    ids_ref: (TB, 1)  int32 token ids (token axis on sublanes)
    w_ref:   (V, D)   embedding table (resident across all grid steps)
    o_ref:   (TB, D)  output block
    """
    vocab, d_model = w_ref.shape
    tb = ids_ref.shape[0]

    ids = ids_ref[...]                                              # (TB, 1) int32
    token_iota = jax.lax.broadcasted_iota(jnp.int32, (tb, vocab), 1)  # (TB, V)
    onehot = (token_iota == ids).astype(w_ref.dtype)                # (TB, V)

    # One-hot row selection on the MXU; HIGHEST precision keeps the selected
    # rows at ~f32 accuracy (the "matmul" is really a gather).
    emb = jnp.dot(
        onehot,
        w_ref[...],
        preferred_element_type=jnp.float32,
        precision=jax.lax.Precision.HIGHEST,
    )                                                               # (TB, D) f32

    o_ref[...] = (emb * math.sqrt(d_model)).astype(o_ref.dtype)


def input_embeddings_forward(token_ids, weight, *, token_block=None):
    """token_ids: int array (..., ), weight: (vocab_size, d_model).

    Returns weight[token_ids] * sqrt(d_model) with shape (*token_ids.shape, d_model).
    """
    orig_shape = token_ids.shape
    V, D = weight.shape

    ids_flat = token_ids.reshape(-1).astype(jnp.int32)
    N = ids_flat.shape[0]

    # Token-block size: multiple of 8 (sublane alignment), capped at 128.
    if token_block is None:
        token_block = min(128, _round_up(N, 8))
    TB = _round_up(min(token_block, _round_up(N, 8)), 8)

    Npad = _round_up(N, TB)
    if Npad != N:
        ids_flat = jnp.pad(ids_flat, (0, Npad - N))     # padded tokens use id 0
    ids_col = ids_flat.reshape(Npad, 1)                 # token axis -> sublanes
    G = Npad // TB

    out = pl.pallas_call(
        _input_embedding_kernel,
        out_shape=jax.ShapeDtypeStruct((Npad, D), weight.dtype),
        grid=(G,),
        in_specs=[
            pl.BlockSpec((TB, 1), lambda g: (g, 0)),    # token ids per block
            pl.BlockSpec((V, D), lambda g: (0, 0)),     # full table, fetched once
        ],
        out_specs=pl.BlockSpec((TB, D), lambda g: (g, 0)),
        compiler_params=pltpu.CompilerParams(
            dimension_semantics=("parallel",),          # megacore-friendly on v7x
        ),
    )(ids_col, weight)

    if Npad != N:
        out = out[:N]
    return out.reshape(*orig_shape, D)


if __name__ == "__main__":
    # Small shapes consistent with the module: batch=2, seq=8, vocab=256, d_model=128.
    B, S, V, D = 2, 8, 256, 128
    key = jax.random.PRNGKey(0)
    k_w, k_ids = jax.random.split(key)

    weight = jax.random.normal(k_w, (V, D), dtype=jnp.float32)       # nn.Embedding.weight
    ids = jax.random.randint(k_ids, (B, S), 0, V, dtype=jnp.int32)   # token indices

    # token_block=8 -> 2 grid steps, exercises the pipelined grid.
    out = input_embeddings_forward(ids, weight, token_block=8)
    out = jax.block_until_ready(out)

    ref = jnp.take(weight, ids, axis=0) * math.sqrt(D)
    assert out.shape == (B, S, D), f"bad output shape {out.shape}"
    assert jnp.allclose(out, ref, rtol=2e-5, atol=2e-5), "mismatch vs embedding reference"

    # Also check the default tiling path (single block covering all tokens).
    out2 = jax.block_until_ready(input_embeddings_forward(ids, weight))
    assert jnp.allclose(out2, ref, rtol=2e-5, atol=2e-5), "mismatch (default tiling)"

    print("KERNEL_OK")
</pallas_src>

<mosaic_0001>
module attributes {stable_mosaic.version = 11 : i64} {
  func.func @_input_embedding_kernel(%arg0: i32, %arg1: memref<8x1xi32, #tpu.memory_space<vmem>>, %arg2: memref<256x128xf32, #tpu.memory_space<vmem>>, %arg3: memref<8x128xf32, #tpu.memory_space<vmem>>) attributes {dimension_semantics = [#tpu.dimension_semantics<parallel>], iteration_bounds = array<i64: 2>, scalar_prefetch = 0 : i64, scratch_operands = 0 : i64, tpu.core_type = #tpu.core_type<tc>, window_params = [{transform_indices = @transform_0, window_bounds = array<i64: 8, 1>}, {pipeline_mode = #tpu.pipeline_mode<synchronous>, transform_indices = @transform_1, window_bounds = array<i64: 256, 128>}, {transform_indices = @transform_2, window_bounds = array<i64: 8, 128>}]} {
    %c0 = arith.constant 0 : index
    %c0_0 = arith.constant 0 : index
    %0 = vector.load %arg1[%c0, %c0_0] : memref<8x1xi32, #tpu.memory_space<vmem>>, vector<8x1xi32>
    %1 = tpu.iota {dimensions = array<i32: 1>} : vector<8x256xi32>
    %2 = vector.broadcast %0 : vector<8x1xi32> to vector<8x256xi32>
    %3 = arith.cmpi eq, %1, %2 : vector<8x256xi32>
    %4 = arith.extui %3 : vector<8x256xi1> to vector<8x256xi32>
    %5 = arith.sitofp %4 : vector<8x256xi32> to vector<8x256xf32>
    %c0_1 = arith.constant 0 : index
    %c0_2 = arith.constant 0 : index
    %6 = vector.load %arg2[%c0_1, %c0_2] : memref<256x128xf32, #tpu.memory_space<vmem>>, vector<256x128xf32>
    %cst = arith.constant dense<0.000000e+00> : vector<8x128xf32>
    %7 = tpu.matmul %5, %6, %cst {dimension_numbers = #tpu.dot_dimension_numbers<[1], [0], [0], [1], [0, 0, 1, 1], [], []>, precision = #tpu.contract_precision<fp32>} : vector<8x256xf32>, vector<256x128xf32>, vector<8x128xf32> -> vector<8x128xf32>
    %cst_3 = arith.constant 11.3137083 : f32
    %8 = vector.broadcast %cst_3 : f32 to vector<8x128xf32>
    %9 = arith.mulf %7, %8 : vector<8x128xf32>
    %c0_4 = arith.constant 0 : index
    %c0_5 = arith.constant 0 : index
    %10 = vector.load %arg3[%c0_4, %c0_5] : memref<8x128xf32, #tpu.memory_space<vmem>>, vector<8x128xf32>
    tpu.vector_store %arg3[%c0_4, %c0_5], %9 {strides = array<i32>} : memref<8x128xf32, #tpu.memory_space<vmem>>, vector<8x128xf32>,
    return
  }
  func.func @transform_0(%arg0: i32) -> (i32, i32) {
    %c0_i32 = arith.constant 0 : i32
    %c0_i32_0 = arith.constant 0 : i32
    return %arg0, %c0_i32 : i32, i32
  }
  func.func @transform_1(%arg0: i32) -> (i32, i32) {
    %c0_i32 = arith.constant 0 : i32
    %c0_i32_0 = arith.constant 0 : i32
    %c0_i32_1 = arith.constant 0 : i32
    return %c0_i32, %c0_i32_0 : i32, i32
  }
  func.func @transform_2(%arg0: i32) -> (i32, i32) {
    %c0_i32 = arith.constant 0 : i32
    %c0_i32_0 = arith.constant 0 : i32
    return %arg0, %c0_i32 : i32, i32
  }
}

</mosaic_0001>

<llo_original>
// kernel: tpu_custom_call.1
$region0: #{tpu_custom_call.1}
  #allocation0 [shape = 'u32[]', space=smem, size = 0x4, offset = 0x4, fixed_abs, tag = 'smem constant byte address 0x4 - core index']
  #allocation1 [shape = 'u32[144,128]{1,0:T(1,128)}', space=vmem, size = 0x12000, scoped, tag = 'internal scratch']
  %s0 = inlined_call_operand.vmem [shape: s32[16,1], index: 0, kind: input, shape index: {}]
  %s1 = inlined_call_operand.hbm [shape: f32[256,128], index: 1, kind: input, shape index: {}]
  %s2 = inlined_call_operand.hbm [shape: f32[16,128], index: 2, kind: output, shape index: {}]
  %s3 = sld [smem:[#allocation0]]
  $region45: #{tpu_custom_call.1} parent=0
    _
  %s5 = ssub.s32 1, %s3
  %s6 = scalar_select 0, %s5, %s3
  $region1: #{tpu_custom_call.1} parent=0
    #allocation2 [shape = 'u8[131072]{0}', space=vmem, size = 0x20000, scoped, tag = 'input window, operand 1, single buffered']
    #allocation3 [shape = 's32[2]{0}', space=sflag, size = 0x8, scoped, tag = 'scoped memory for tpu_custom_call.1']
    #allocation4 [shape = 's32[2]{0}', space=sflag, size = 0x8, scoped, tag = 'scoped memory for tpu_custom_call.1']
    #allocation5 [shape = 'u8[8192]{0}', space=vmem, size = 0x2000, scoped, tag = 'output window, operand 0']
    %7 = vsyncpa [#allocation3], 0
    %8 = vsyncpa [#allocation4], 0
    %s9 = scalar_lea.sflag [#allocation4], 1
    %10 = vsyncpa %s9, 0
    loop: start=0, step=1, limit=4
    $region2: #{tpu_custom_call.1} parent=1 // loop_pre_header
      _
    $region3: #{tpu_custom_call.1} parent=1 // loop_header
      %s12 = sphi 0, %s16
      %p13 = scmp.ge.s32.totalorder %s12, 4
      %s22 = sphi 0, %s24
      %s25 = sphi 0, %s22
      %s26 = sphi 0, %s25
      %s42 = sphi 0, %s26
      %s46 = sphi 0, %s46
      %s48 = sphi 0, %s46
      %s49 = sphi 0, %s48
      %s63 = sphi 0, %s49
      %s69 = sphi 0, %s71
      %s72 = sphi 0, %s69
      %s73 = sphi 0, %s72
      %s89 = sphi 0, %s73
    $region4: #{tpu_custom_call.1} parent=1 // loop_header_branch
      %15 = sbr.rel (%p13) target = $region8
    $region5: #{tpu_custom_call.1} parent=1 // loop_body
      %s17 = ssub.s32 %s12, 1
      %s18 = ssub.s32 %s12, 2
      %s19 = sadd.s32 %s12, 1
      %s20 = ssub.s32 %s12, %s19
      %p21 = scmp.eq.s32.totalorder %s20, 0
      %s23 = sadd.s32 %s22, 1
      %s24 = scalar_select %p21, %s22, %s23
      %p27 = pneg %p21
      %p28 = scmp.eq.s32.totalorder %s12, 1
      %p29 = por %p27, %p28
      %p30 = scmp.ne.s32.totalorder %s22, %s25
      %p31 = scmp.eq.s32.totalorder %s12, 0
      %p32 = por %p30, %p31
      %p33 = scmp.ne.s32.totalorder %s22, %s25
      %p34 = scmp.eq.s32.totalorder %s17, 1
      %p35 = por %p33, %p34
      %p36 = scmp.ne.s32.totalorder %s25, %s26
      %p37 = scmp.eq.s32.totalorder %s17, 0
      %p38 = por %p36, %p37
      %p39 = scmp.ne.s32.totalorder %s25, %s26
      %p40 = scmp.eq.s32.totalorder %s18, 1
      %p41 = por %p39, %p40
      %p43 = scmp.ne.s32.totalorder %s26, %s42
      %p44 = scmp.eq.s32.totalorder %s18, 0
      %p45 = por %p43, %p44
      %s47 = sadd.s32 %s46, 1
      %p50 = scmp.eq.s32.totalorder %s12, 1
      %p51 = scmp.ne.s32.totalorder %s46, %s48
      %p52 = scmp.eq.s32.totalorder %s12, 0
      %p53 = por %p51, %p52
      %p54 = scmp.ne.s32.totalorder %s46, %s48
      %p55 = scmp.eq.s32.totalorder %s17, 1
      %p56 = por %p54, %p55
      %p57 = scmp.ne.s32.totalorder %s48, %s49
      %p58 = scmp.eq.s32.totalorder %s17, 0
      %p59 = por %p57, %p58
      %p60 = scmp.ne.s32.totalorder %s48, %s49
      %p61 = scmp.eq.s32.totalorder %s18, 1
      %p62 = por %p60, %p61
      %p64 = scmp.ne.s32.totalorder %s49, %s63
      %p65 = scmp.eq.s32.totalorder %s18, 0
      %p66 = por %p64, %p65
      %s67 = ssub.s32 %s12, %s19
      %p68 = scmp.eq.s32.totalorder %s67, 0
      %s70 = sadd.s32 %s69, 1
      %s71 = scalar_select %p68, %s69, %s70
      %p74 = pneg %p68
      %p75 = scmp.eq.s32.totalorder %s12, 1
      %p76 = por %p74, %p75
      %p77 = scmp.ne.s32.totalorder %s69, %s72
      %p78 = scmp.eq.s32.totalorder %s12, 0
      %p79 = por %p77, %p78
      %p80 = scmp.ne.s32.totalorder %s69, %s72
      %p81 = scmp.eq.s32.totalorder %s17, 1
      %p82 = por %p80, %p81
      %p83 = scmp.ne.s32.totalorder %s72, %s73
      %p84 = scmp.eq.s32.totalorder %s17, 0
      %p85 = por %p83, %p84
      %p86 = scmp.ne.s32.totalorder %s72, %s73
      %p87 = scmp.eq.s32.totalorder %s18, 1
      %p88 = por %p86, %p87
      %p90 = scmp.ne.s32.totalorder %s73, %s89
      %p91 = scmp.eq.s32.totalorder %s18, 0
      %p92 = por %p90, %p91
      %p93 = scmp.le.s32.totalorder 1, %s12
      %p94 = scmp.lt.s32.totalorder %s12, 3
      %p95 = pnand %p93, %p94
      %p96 = pneg %p95
      // Predicated region
      $region9: #{tpu_custom_call.1} parent=5 // pred_check
        _
      $region10: #{tpu_custom_call.1} parent=5 // pred_check_branch
        %98 = sbr.rel (%p95) target = $region12
      $region11: #{tpu_custom_call.1} parent=5 // pred_region
        %s99 = ssub.s32 %s12, 1
        // Predicated region
        $region13: #{tpu_custom_call.1} parent=11 // pred_check
          %p100 = pneg %p59
        $region14: #{tpu_custom_call.1} parent=11 // pred_check_branch
          %102 = sbr.rel (%p100) target = $region16
        $region15: #{tpu_custom_call.1} parent=11 // pred_region
          %s104 = ssub.s32 4096, 4096
          %105 = vsyncadd [#allocation3], %s104
          %s106 = sshll.u32 [#allocation2], 4
          %s107 = int_to_ptr.vmem [resolvable:$true] %s106
          %112 = dma.hbm_to_vmem [thread:$0]  %s1, 4096, %s107, [#allocation3], 128, 128, 8
        $region16: #{tpu_custom_call.1} parent=11 // pred_fallthru
          _
      $region12: #{tpu_custom_call.1} parent=5 // pred_fallthru
        _
      %p113 = scmp.lt.s32.totalorder %s12, 2
      // Predicated region
      $region17: #{tpu_custom_call.1} parent=5 // pred_check
        %p114 = pneg %p113
      $region18: #{tpu_custom_call.1} parent=5 // pred_check_branch
        %116 = sbr.rel (%p114) target = $region20
      $region19: #{tpu_custom_call.1} parent=5 // pred_region
        // Predicated region
        $region21: #{tpu_custom_call.1} parent=19 // pred_check
          %p117 = pneg %p32
        $region22: #{tpu_custom_call.1} parent=19 // pred_check_branch
          %119 = sbr.rel (%p117) target = $region24
        $region23: #{tpu_custom_call.1} parent=19 // pred_region
          %p120 = scmp.lt.s32.totalorder %s12, 1
          %s121 = scalar_select %p120, %s12, 1
          %s122 = smul.addr %s121, 8
          %s123 = scalar_lea.vmem %s0, %s122
        $region24: #{tpu_custom_call.1} parent=19 // pred_fallthru
          _
      $region20: #{tpu_custom_call.1} parent=5 // pred_fallthru
        _
      %p124 = scmp.le.s32.totalorder 1, %s12
      %p125 = scmp.lt.s32.totalorder %s12, 3
      %p126 = pnand %p124, %p125
      %p127 = pneg %p126
      // Predicated region
      $region25: #{tpu_custom_call.1} parent=5 // pred_check
        _
      $region26: #{tpu_custom_call.1} parent=5 // pred_check_branch
        %129 = sbr.rel (%p126) target = $region28
      $region27: #{tpu_custom_call.1} parent=5 // pred_region
        %s130 = ssub.s32 %s12, 1
        // Predicated region
        $region29: #{tpu_custom_call.1} parent=27 // pred_check
          %p131 = pneg %p59
        $region30: #{tpu_custom_call.1} parent=27 // pred_check_branch
          %133 = sbr.rel (%p131) target = $region32
        $region31: #{tpu_custom_call.1} parent=27 // pred_region
          %134 = dma.done [#allocation3], 4096
        $region32: #{tpu_custom_call.1} parent=27 // pred_fallthru
          _
        %p135 = scmp.lt.s32.totalorder %s17, 1
        %s136 = scalar_select %p135, %s17, 1
        %s137 = smul.addr %s136, 8
        %s138 = scalar_lea.vmem %s0, %s137
        %p139 = pneg %p38
        %p140 = pneg %p35
        %p141 = pneg %p59
        %p142 = pneg %p56
        %p143 = pneg %p85
        %p144 = pneg %p82
        %s145 = sand.u32 %s72, 1
        %s146 = scalar_lea.sflag [#allocation4], %s145
        %s147 = sand.u32 %s72, 1
        %s148 = smul.addr %s147, 8
        %s149 = scalar_lea.vmem [#allocation5], %s148
        %p150 = scmp.lt.s32.totalorder %s17, 1
        %s151 = scalar_select %p150, %s17, 1
        %s152 = smul.addr %s151, 8
        %s153 = scalar_lea.vmem %s0, %s152
        %v154 = vld [vmem:[%s153] sm:$0xff]
        %v155 = vlaneseq
        %v156 = vand.u32 %v155, 127
        %v157 = vadd.s32 %v156, 128
        %158 = vset.pattern.permute.xlu0 0
        %159 = vperm.xlu0 %158, %v154
        %v160 = vpop.permute.xlu0 %159
        %vm161 = vcmp.eq.s32.totalorder %v156, %v160
        %vm162 = vcmp.eq.s32.totalorder %v157, %v160
        %v163 = vsel %vm161, 1, 0
        %v164 = vsel %vm162, 1, 0
        %v165 = vcvt.s32.f32 %v163
        %v166 = vcvt.s32.f32 %v164
        %v167 = vld [vmem:[#allocation2] sm:$0xff]
        %v168 = vld [vmem:[#allocation2 + $0x8] sm:$0xff]
        %v169 = vld [vmem:[#allocation2 + $0x10] sm:$0xff]
        %v170 = vld [vmem:[#allocation2 + $0x18] sm:$0xff]
        %v171 = vld [vmem:[#allocation2 + $0x20] sm:$0xff]
        %v172 = vld [vmem:[#allocation2 + $0x28] sm:$0xff]
        %v173 = vld [vmem:[#allocation2 + $0x30] sm:$0xff]
        %v174 = vld [vmem:[#allocation2 + $0x38] sm:$0xff]
        %v175 = vld [vmem:[#allocation2 + $0x40] sm:$0xff]
        %v176 = vld [vmem:[#allocation2 + $0x48] sm:$0xff]
        %v177 = vld [vmem:[#allocation2 + $0x50] sm:$0xff]
        %v178 = vld [vmem:[#allocation2 + $0x58] sm:$0xff]
        %v179 = vld [vmem:[#allocation2 + $0x60] sm:$0xff]
        %v180 = vld [vmem:[#allocation2 + $0x68] sm:$0xff]
        %v181 = vld [vmem:[#allocation2 + $0x70] sm:$0xff]
        %v182 = vld [vmem:[#allocation2 + $0x78] sm:$0xff]
        %v183 = vld [vmem:[#allocation2 + $0x80] sm:$0xff]
        %v184 = vld [vmem:[#allocation2 + $0x88] sm:$0xff]
        %v185 = vld [vmem:[#allocation2 + $0x90] sm:$0xff]
        %v186 = vld [vmem:[#allocation2 + $0x98] sm:$0xff]
        %v187 = vld [vmem:[#allocation2 + $0xa0] sm:$0xff]
        %v188 = vld [vmem:[#allocation2 + $0xa8] sm:$0xff]
        %v189 = vld [vmem:[#allocation2 + $0xb0] sm:$0xff]
        %v190 = vld [vmem:[#allocation2 + $0xb8] sm:$0xff]
        %v191 = vld [vmem:[#allocation2 + $0xc0] sm:$0xff]
        %v192 = vld [vmem:[#allocation2 + $0xc8] sm:$0xff]
        %v193 = vld [vmem:[#allocation2 + $0xd0] sm:$0xff]
        %v194 = vld [vmem:[#allocation2 + $0xd8] sm:$0xff]
        %v195 = vld [vmem:[#allocation2 + $0xe0] sm:$0xff]
        %v196 = vld [vmem:[#allocation2 + $0xe8] sm:$0xff]
        %v197 = vld [vmem:[#allocation2 + $0xf0] sm:$0xff]
        %v198 = vld [vmem:[#allocation2 + $0xf8] sm:$0xff]
        %199 = vmatprep.subr.mxu0 0.0
        %v200 = vand.u32 %v167, 4294901760
        %201 = vmatpush1.msra.mxu0 %v200
        %202 = vmatprep.subr.mxu0 0.0
        %v203 = vand.u32 %v168, 4294901760
        %204 = vmatpush1.msra.mxu0 %v203
        %205 = vmatprep.subr.mxu0 0.0
        %v206 = vand.u32 %v169, 4294901760
        %207 = vmatpush1.msra.mxu0 %v206
        %208 = vmatprep.subr.mxu0 0.0
        %v209 = vand.u32 %v170, 4294901760
        %210 = vmatpush1.msra.mxu0 %v209
        %211 = vmatprep.subr.mxu0 0.0
        %v212 = vand.u32 %v171, 4294901760
        %213 = vmatpush1.msra.mxu0 %v212
        %214 = vmatprep.subr.mxu0 0.0
        %v215 = vand.u32 %v172, 4294901760
        %216 = vmatpush1.msra.mxu0 %v215
        %217 = vmatprep.subr.mxu0 0.0
        %v218 = vand.u32 %v173, 4294901760
        %219 = vmatpush1.msra.mxu0 %v218
        %220 = vmatprep.subr.mxu0 0.0
        %v221 = vand.u32 %v174, 4294901760
        %222 = vmatpush1.msra.mxu0 %v221
        %223 = vmatprep.subr.mxu0 0.0
        %v224 = vand.u32 %v175, 4294901760
        %225 = vmatpush1.msra.mxu0 %v224
        %226 = vmatprep.subr.mxu0 0.0
        %v227 = vand.u32 %v176, 4294901760
        %228 = vmatpush1.msra.mxu0 %v227
        %229 = vmatprep.subr.mxu0 0.0
        %v230 = vand.u32 %v177, 4294901760
        %231 = vmatpush1.msra.mxu0 %v230
        %232 = vmatprep.subr.mxu0 0.0
        %v233 = vand.u32 %v178, 4294901760
        %234 = vmatpush1.msra.mxu0 %v233
        %235 = vmatprep.subr.mxu0 0.0
        %v236 = vand.u32 %v179, 4294901760
        %237 = vmatpush1.msra.mxu0 %v236
        %238 = vmatprep.subr.mxu0 0.0
        %v239 = vand.u32 %v180, 4294901760
        %240 = vmatpush1.msra.mxu0 %v239
        %241 = vmatprep.subr.mxu0 0.0
        %v242 = vand.u32 %v181, 4294901760
        %243 = vmatpush1.msra.mxu0 %v242
        %244 = vmatprep.subr.mxu0 0.0
        %v245 = vand.u32 %v182, 4294901760
        %246 = vmatpush1.msra.mxu0 %v245
        %247 = vmatprep.subr.mxu0 0.0
        %v248 = vand.u32 %v183, 4294901760
        %249 = vmatpush1.msra.mxu0 %v248
        %250 = vmatprep.subr.mxu0 0.0
        %v251 = vand.u32 %v184, 4294901760
        %252 = vmatpush1.msra.mxu0 %v251
        %253 = vmatprep.subr.mxu0 0.0
        %v254 = vand.u32 %v185, 4294901760
        %255 = vmatpush1.msra.mxu0 %v254
        %256 = vmatprep.subr.mxu0 0.0
        %v257 = vand.u32 %v186, 4294901760
        %258 = vmatpush1.msra.mxu0 %v257
        %259 = vmatprep.subr.mxu0 0.0
        %v260 = vand.u32 %v187, 4294901760
        %261 = vmatpush1.msra.mxu0 %v260
        %262 = vmatprep.subr.mxu0 0.0
        %v263 = vand.u32 %v188, 4294901760
        %264 = vmatpush1.msra.mxu0 %v263
        %265 = vmatprep.subr.mxu0 0.0
        %v266 = vand.u32 %v189, 4294901760
        %267 = vmatpush1.msra.mxu0 %v266
        %268 = vmatprep.subr.mxu0 0.0
        %v269 = vand.u32 %v190, 4294901760
        %270 = vmatpush1.msra.mxu0 %v269
        %271 = vmatprep.subr.mxu0 0.0
        %v272 = vand.u32 %v191, 4294901760
        %273 = vmatpush1.msra.mxu0 %v272
        %274 = vmatprep.subr.mxu0 0.0
        %v275 = vand.u32 %v192, 4294901760
        %276 = vmatpush1.msra.mxu0 %v275
        %277 = vmatprep.subr.mxu0 0.0
        %v278 = vand.u32 %v193, 4294901760
        %279 = vmatpush1.msra.mxu0 %v278
        %280 = vmatprep.subr.mxu0 0.0
        %v281 = vand.u32 %v194, 4294901760
        %282 = vmatpush1.msra.mxu0 %v281
        %283 = vmatprep.subr.mxu0 0.0
        %v284 = vand.u32 %v195, 4294901760
        %285 = vmatpush1.msra.mxu0 %v284
        %286 = vmatprep.subr.mxu0 0.0
        %v287 = vand.u32 %v196, 4294901760
        %288 = vmatpush1.msra.mxu0 %v287
        %289 = vmatprep.subr.mxu0 0.0
        %v290 = vand.u32 %v197, 4294901760
        %291 = vmatpush1.msra.mxu0 %v290
        %292 = vmatprep.subr.mxu0 0.0
        %v293 = vand.u32 %v198, 4294901760
        %294 = vmatpush1.msra.mxu0 %v293
        %v295 = vand.u32 %v166, 4294901760
        %v296 = vsub.f32 %v166, %v295
        %v297 = vand.u32 %v296, 4294901760
        %v298 = vsub.f32 %v296, %v297
        %v299 = vand.u32 %v298, 4294901760
        %300 = vmatprep.mubr.f32.mxu0 %v299
        %v301 = vand.u32 %v165, 4294901760
        %v302 = vsub.f32 %v165, %v301
        %v303 = vand.u32 %v302, 4294901760
        %v304 = vsub.f32 %v302, %v303
        %v305 = vand.u32 %v304, 4294901760
        %306 = vmatmul.mubr.f32.gmra.mrb[0].mxu0 %v305
        %v307 = vpop.f32.mrb[0].mxu0
        %v308 = vadd.f32 0.0, %v307
        %v309 = vpop.f32.mrb[0].mxu0
        %310 = vdwg.mxu0
        %311 = vmatprep.subr.mxu0 0.0
        %v312 = vand.u32 %v167, 4294901760
        %v313 = vsub.f32 %v167, %v312
        %v314 = vand.u32 %v313, 4294901760
        %v315 = vsub.f32 %v313, %v314
        %v316 = vand.u32 %v315, 4294901760
        %317 = vmatpush1.msra.mxu0 %v316
        %318 = vmatprep.subr.mxu0 0.0
        %v319 = vand.u32 %v168, 4294901760
        %v320 = vsub.f32 %v168, %v319
        %v321 = vand.u32 %v320, 4294901760
        %v322 = vsub.f32 %v320, %v321
        %v323 = vand.u32 %v322, 4294901760
        %324 = vmatpush1.msra.mxu0 %v323
        %325 = vmatprep.subr.mxu0 0.0
        %v326 = vand.u32 %v169, 4294901760
        %v327 = vsub.f32 %v169, %v326
        %v328 = vand.u32 %v327, 4294901760
        %v329 = vsub.f32 %v327, %v328
        %v330 = vand.u32 %v329, 4294901760
        %331 = vmatpush1.msra.mxu0 %v330
        %332 = vmatprep.subr.mxu0 0.0
        %v333 = vand.u32 %v170, 4294901760
        %v334 = vsub.f32 %v170, %v333
        %v335 = vand.u32 %v334, 4294901760
        %v336 = vsub.f32 %v334, %v335
        %v337 = vand.u32 %v336, 4294901760
        %338 = vmatpush1.msra.mxu0 %v337
        %339 = vmatprep.subr.mxu0 0.0
        %v340 = vand.u32 %v171, 4294901760
        %v341 = vsub.f32 %v171, %v340
        %v342 = vand.u32 %v341, 4294901760
        %v343 = vsub.f32 %v341, %v342
        %v344 = vand.u32 %v343, 4294901760
        %345 = vmatpush1.msra.mxu0 %v344
        %346 = vmatprep.subr.mxu0 0.0
        %v347 = vand.u32 %v172, 4294901760
        %v348 = vsub.f32 %v172, %v347
        %v349 = vand.u32 %v348, 4294901760
        %v350 = vsub.f32 %v348, %v349
        %v351 = vand.u32 %v350, 4294901760
        %352 = vmatpush1.msra.mxu0 %v351
        %353 = vmatprep.subr.mxu0 0.0
        %v354 = vand.u32 %v173, 4294901760
        %v355 = vsub.f32 %v173, %v354
        %v356 = vand.u32 %v355, 4294901760
        %v357 = vsub.f32 %v355, %v356
        %v358 = vand.u32 %v357, 4294901760
        %359 = vmatpush1.msra.mxu0 %v358
        %360 = vmatprep.subr.mxu0 0.0
        %v361 = vand.u32 %v174, 4294901760
        %v362 = vsub.f32 %v174, %v361
        %v363 = vand.u32 %v362, 4294901760
        %v364 = vsub.f32 %v362, %v363
        %v365 = vand.u32 %v364, 4294901760
        %366 = vmatpush1.msra.mxu0 %v365
        %367 = vmatprep.subr.mxu0 0.0
        %v368 = vand.u32 %v175, 4294901760
        %v369 = vsub.f32 %v175, %v368
        %v370 = vand.u32 %v369, 4294901760
        %v371 = vsub.f32 %v369, %v370
        %v372 = vand.u32 %v371, 4294901760
        %373 = vmatpush1.msra.mxu0 %v372
        %374 = vmatprep.subr.mxu0 0.0
        %v375 = vand.u32 %v176, 4294901760
        %v376 = vsub.f32 %v176, %v375
        %v377 = vand.u32 %v376, 4294901760
        %v378 = vsub.f32 %v376, %v377
        %v379 = vand.u32 %v378, 4294901760
        %380 = vmatpush1.msra.mxu0 %v379
        %381 = vmatprep.subr.mxu0 0.0
        %v382 = vand.u32 %v177, 4294901760
        %v383 = vsub.f32 %v177, %v382
        %v384 = vand.u32 %v383, 4294901760
        %v385 = vsub.f32 %v383, %v384
        %v386 = vand.u32 %v385, 4294901760
        %387 = vmatpush1.msra.mxu0 %v386
        %388 = vmatprep.subr.mxu0 0.0
        %v389 = vand.u32 %v178, 4294901760
        %v390 = vsub.f32 %v178, %v389
        %v391 = vand.u32 %v390, 4294901760
        %v392 = vsub.f32 %v390, %v391
        %v393 = vand.u32 %v392, 4294901760
        %394 = vmatpush1.msra.mxu0 %v393
        %395 = vmatprep.subr.mxu0 0.0
        %v396 = vand.u32 %v179, 4294901760
        %v397 = vsub.f32 %v179, %v396
        %v398 = vand.u32 %v397, 4294901760
        %v399 = vsub.f32 %v397, %v398
        %v400 = vand.u32 %v399, 4294901760
        %401 = vmatpush1.msra.mxu0 %v400
        %402 = vmatprep.subr.mxu0 0.0
        %v403 = vand.u32 %v180, 4294901760
        %v404 = vsub.f32 %v180, %v403
        %v405 = vand.u32 %v404, 4294901760
        %v406 = vsub.f32 %v404, %v405
        %v407 = vand.u32 %v406, 4294901760
        %408 = vmatpush1.msra.mxu0 %v407
        %409 = vmatprep.subr.mxu0 0.0
        %v410 = vand.u32 %v181, 4294901760
        %v411 = vsub.f32 %v181, %v410
        %v412 = vand.u32 %v411, 4294901760
        %v413 = vsub.f32 %v411, %v412
        %v414 = vand.u32 %v413, 4294901760
        %415 = vmatpush1.msra.mxu0 %v414
        %416 = vmatprep.subr.mxu0 0.0
        %v417 = vand.u32 %v182, 4294901760
        %v418 = vsub.f32 %v182, %v417
        %v419 = vand.u32 %v418, 4294901760
        %v420 = vsub.f32 %v418, %v419
        %v421 = vand.u32 %v420, 4294901760
        %422 = vmatpush1.msra.mxu0 %v421
        %423 = vmatprep.subr.mxu0 0.0
        %v424 = vand.u32 %v183, 4294901760
        %v425 = vsub.f32 %v183, %v424
        %v426 = vand.u32 %v425, 4294901760
        %v427 = vsub.f32 %v425, %v426
        %v428 = vand.u32 %v427, 4294901760
        %429 = vmatpush1.msra.mxu0 %v428
        %430 = vmatprep.subr.mxu0 0.0
        %v431 = vand.u32 %v184, 4294901760
        %v432 = vsub.f32 %v184, %v431
        %v433 = vand.u32 %v432, 4294901760
        %v434 = vsub.f32 %v432, %v433
        %v435 = vand.u32 %v434, 4294901760
        %436 = vmatpush1.msra.mxu0 %v435
        %437 = vmatprep.subr.mxu0 0.0
        %v438 = vand.u32 %v185, 4294901760
        %v439 = vsub.f32 %v185, %v438
        %v440 = vand.u32 %v439, 4294901760
        %v441 = vsub.f32 %v439, %v440
        %v442 = vand.u32 %v441, 4294901760
        %443 = vmatpush1.msra.mxu0 %v442
        %444 = vmatprep.subr.mxu0 0.0
        %v445 = vand.u32 %v186, 4294901760
        %v446 = vsub.f32 %v186, %v445
        %v447 = vand.u32 %v446, 4294901760
        %v448 = vsub.f32 %v446, %v447
        %v449 = vand.u32 %v448, 4294901760
        %450 = vmatpush1.msra.mxu0 %v449
        %451 = vmatprep.subr.mxu0 0.0
        %v452 = vand.u32 %v187, 4294901760
        %v453 = vsub.f32 %v187, %v452
        %v454 = vand.u32 %v453, 4294901760
        %v455 = vsub.f32 %v453, %v454
        %v456 = vand.u32 %v455, 4294901760
        %457 = vmatpush1.msra.mxu0 %v456
        %458 = vmatprep.subr.mxu0 0.0
        %v459 = vand.u32 %v188, 4294901760
        %v460 = vsub.f32 %v188, %v459
        %v461 = vand.u32 %v460, 4294901760
        %v462 = vsub.f32 %v460, %v461
        %v463 = vand.u32 %v462, 4294901760
        %464 = vmatpush1.msra.mxu0 %v463
        %465 = vmatprep.subr.mxu0 0.0
        %v466 = vand.u32 %v189, 4294901760
        %v467 = vsub.f32 %v189, %v466
        %v468 = vand.u32 %v467, 4294901760
        %v469 = vsub.f32 %v467, %v468
        %v470 = vand.u32 %v469, 4294901760
        %471 = vmatpush1.msra.mxu0 %v470
        %472 = vmatprep.subr.mxu0 0.0
        %v473 = vand.u32 %v190, 4294901760
        %v474 = vsub.f32 %v190, %v473
        %v475 = vand.u32 %v474, 4294901760
        %v476 = vsub.f32 %v474, %v475
        %v477 = vand.u32 %v476, 4294901760
        %478 = vmatpush1.msra.mxu0 %v477
        %479 = vmatprep.subr.mxu0 0.0
        %v480 = vand.u32 %v191, 4294901760
        %v481 = vsub.f32 %v191, %v480
        %v482 = vand.u32 %v481, 4294901760
        %v483 = vsub.f32 %v481, %v482
        %v484 = vand.u32 %v483, 4294901760
        %485 = vmatpush1.msra.mxu0 %v484
        %486 = vmatprep.subr.mxu0 0.0
        %v487 = vand.u32 %v192, 4294901760
        %v488 = vsub.f32 %v192, %v487
        %v489 = vand.u32 %v488, 4294901760
        %v490 = vsub.f32 %v488, %v489
        %v491 = vand.u32 %v490, 4294901760
        %492 = vmatpush1.msra.mxu0 %v491
        %493 = vmatprep.subr.mxu0 0.0
        %v494 = vand.u32 %v193, 4294901760
        %v495 = vsub.f32 %v193, %v494
        %v496 = vand.u32 %v495, 4294901760
        %v497 = vsub.f32 %v495, %v496
        %v498 = vand.u32 %v497, 4294901760
        %499 = vmatpush1.msra.mxu0 %v498
        %500 = vmatprep.subr.mxu0 0.0
        %v501 = vand.u32 %v194, 4294901760
        %v502 = vsub.f32 %v194, %v501
        %v503 = vand.u32 %v502, 4294901760
        %v504 = vsub.f32 %v502, %v503
        %v505 = vand.u32 %v504, 4294901760
        %506 = vmatpush1.msra.mxu0 %v505
        %507 = vmatprep.subr.mxu0 0.0
        %v508 = vand.u32 %v195, 4294901760
        %v509 = vsub.f32 %v195, %v508
        %v510 = vand.u32 %v509, 4294901760
        %v511 = vsub.f32 %v509, %v510
        %v512 = vand.u32 %v511, 4294901760
        %513 = vmatpush1.msra.mxu0 %v512
        %514 = vmatprep.subr.mxu0 0.0
        %v515 = vand.u32 %v196, 4294901760
        %v516 = vsub.f32 %v196, %v515
        %v517 = vand.u32 %v516, 4294901760
        %v518 = vsub.f32 %v516, %v517
        %v519 = vand.u32 %v518, 4294901760
        %520 = vmatpush1.msra.mxu0 %v519
        %521 = vmatprep.subr.mxu0 0.0
        %v522 = vand.u32 %v197, 4294901760
        %v523 = vsub.f32 %v197, %v522
        %v524 = vand.u32 %v523, 4294901760
        %v525 = vsub.f32 %v523, %v524
        %v526 = vand.u32 %v525, 4294901760
        %527 = vmatpush1.msra.mxu0 %v526
        %528 = vmatprep.subr.mxu0 0.0
        %v529 = vand.u32 %v198, 4294901760
        %v530 = vsub.f32 %v198, %v529
        %v531 = vand.u32 %v530, 4294901760
        %v532 = vsub.f32 %v530, %v531
        %v533 = vand.u32 %v532, 4294901760
        %534 = vmatpush1.msra.mxu0 %v533
        %v535 = vand.u32 %v166, 4294901760
        %536 = vmatprep.mubr.f32.mxu0 %v535
        %v537 = vand.u32 %v165, 4294901760
        %538 = vmatmul.mubr.f32.gmra.mrb[0].mxu0 %v537
        %v539 = vpop.f32.mrb[0].mxu0
        %v540 = vadd.f32 %v308, %v539
        %v541 = vpop.f32.mrb[0].mxu0
        %542 = vdwg.mxu0
        %543 = vmatprep.subr.mxu0 0.0
        %v544 = vand.u32 %v167, 4294901760
        %v545 = vsub.f32 %v167, %v544
        %546 = vmatpush1.msra.mxu0 %v545
        %547 = vmatprep.subr.mxu0 0.0
        %v548 = vand.u32 %v168, 4294901760
        %v549 = vsub.f32 %v168, %v548
        %550 = vmatpush1.msra.mxu0 %v549
        %551 = vmatprep.subr.mxu0 0.0
        %v552 = vand.u32 %v169, 4294901760
        %v553 = vsub.f32 %v169, %v552
        %554 = vmatpush1.msra.mxu0 %v553
        %555 = vmatprep.subr.mxu0 0.0
        %v556 = vand.u32 %v170, 4294901760
        %v557 = vsub.f32 %v170, %v556
        %558 = vmatpush1.msra.mxu0 %v557
        %559 = vmatprep.subr.mxu0 0.0
        %v560 = vand.u32 %v171, 4294901760
        %v561 = vsub.f32 %v171, %v560
        %562 = vmatpush1.msra.mxu0 %v561
        %563 = vmatprep.subr.mxu0 0.0
        %v564 = vand.u32 %v172, 4294901760
        %v565 = vsub.f32 %v172, %v564
        %566 = vmatpush1.msra.mxu0 %v565
        %567 = vmatprep.subr.mxu0 0.0
        %v568 = vand.u32 %v173, 4294901760
        %v569 = vsub.f32 %v173, %v568
        %570 = vmatpush1.msra.mxu0 %v569
        %571 = vmatprep.subr.mxu0 0.0
        %v572 = vand.u32 %v174, 4294901760
        %v573 = vsub.f32 %v174, %v572
        %574 = vmatpush1.msra.mxu0 %v573
        %575 = vmatprep.subr.mxu0 0.0
        %v576 = vand.u32 %v175, 4294901760
        %v577 = vsub.f32 %v175, %v576
        %578 = vmatpush1.msra.mxu0 %v577
        %579 = vmatprep.subr.mxu0 0.0
        %v580 = vand.u32 %v176, 4294901760
        %v581 = vsub.f32 %v176, %v580
        %582 = vmatpush1.msra.mxu0 %v581
        %583 = vmatprep.subr.mxu0 0.0
        %v584 = vand.u32 %v177, 4294901760
        %v585 = vsub.f32 %v177, %v584
        %586 = vmatpush1.msra.mxu0 %v585
        %587 = vmatprep.subr.mxu0 0.0
        %v588 = vand.u32 %v178, 4294901760
        %v589 = vsub.f32 %v178, %v588
        %590 = vmatpush1.msra.mxu0 %v589
        %591 = vmatprep.subr.mxu0 0.0
        %v592 = vand.u32 %v179, 4294901760
        %v593 = vsub.f32 %v179, %v592
        %594 = vmatpush1.msra.mxu0 %v593
        %595 = vmatprep.subr.mxu0 0.0
        %v596 = vand.u32 %v180, 4294901760
        %v597 = vsub.f32 %v180, %v596
        %598 = vmatpush1.msra.mxu0 %v597
        %599 = vmatprep.subr.mxu0 0.0
        %v600 = vand.u32 %v181, 4294901760
        %v601 = vsub.f32 %v181, %v600
        %602 = vmatpush1.msra.mxu0 %v601
        %603 = vmatprep.subr.mxu0 0.0
        %v604 = vand.u32 %v182, 4294901760
        %v605 = vsub.f32 %v182, %v604
        %606 = vmatpush1.msra.mxu0 %v605
        %607 = vmatprep.subr.mxu0 0.0
        %v608 = vand.u32 %v183, 4294901760
        %v609 = vsub.f32 %v183, %v608
        %610 = vmatpush1.msra.mxu0 %v609
        %611 = vmatprep.subr.mxu0 0.0
        %v612 = vand.u32 %v184, 4294901760
        %v613 = vsub.f32 %v184, %v612
        %614 = vmatpush1.msra.mxu0 %v613
        %615 = vmatprep.subr.mxu0 0.0
        %v616 = vand.u32 %v185, 4294901760
        %v617 = vsub.f32 %v185, %v616
        %618 = vmatpush1.msra.mxu0 %v617
        %619 = vmatprep.subr.mxu0 0.0
        %v620 = vand.u32 %v186, 4294901760
        %v621 = vsub.f32 %v186, %v620
        %622 = vmatpush1.msra.mxu0 %v621
        %623 = vmatprep.subr.mxu0 0.0
        %v624 = vand.u32 %v187, 4294901760
        %v625 = vsub.f32 %v187, %v624
        %626 = vmatpush1.msra.mxu0 %v625
        %627 = vmatprep.subr.mxu0 0.0
        %v628 = vand.u32 %v188, 4294901760
        %v629 = vsub.f32 %v188, %v628
        %630 = vmatpush1.msra.mxu0 %v629
        %631 = vmatprep.subr.mxu0 0.0
        %v632 = vand.u32 %v189, 4294901760
        %v633 = vsub.f32 %v189, %v632
        %634 = vmatpush1.msra.mxu0 %v633
        %635 = vmatprep.subr.mxu0 0.0
        %v636 = vand.u32 %v190, 4294901760
        %v637 = vsub.f32 %v190, %v636
        %638 = vmatpush1.msra.mxu0 %v637
        %639 = vmatprep.subr.mxu0 0.0
        %v640 = vand.u32 %v191, 4294901760
        %v641 = vsub.f32 %v191, %v640
        %642 = vmatpush1.msra.mxu0 %v641
        %643 = vmatprep.subr.mxu0 0.0
        %v644 = vand.u32 %v192, 4294901760
        %v645 = vsub.f32 %v192, %v644
        %646 = vmatpush1.msra.mxu0 %v645
        %647 = vmatprep.subr.mxu0 0.0
        %v648 = vand.u32 %v193, 4294901760
        %v649 = vsub.f32 %v193, %v648
        %650 = vmatpush1.msra.mxu0 %v649
        %651 = vmatprep.subr.mxu0 0.0
        %v652 = vand.u32 %v194, 4294901760
        %v653 = vsub.f32 %v194, %v652
        %654 = vmatpush1.msra.mxu0 %v653
        %655 = vmatprep.subr.mxu0 0.0
        %v656 = vand.u32 %v195, 4294901760
        %v657 = vsub.f32 %v195, %v656
        %658 = vmatpush1.msra.mxu0 %v657
        %659 = vmatprep.subr.mxu0 0.0
        %v660 = vand.u32 %v196, 4294901760
        %v661 = vsub.f32 %v196, %v660
        %662 = vmatpush1.msra.mxu0 %v661
        %663 = vmatprep.subr.mxu0 0.0
        %v664 = vand.u32 %v197, 4294901760
        %v665 = vsub.f32 %v197, %v664
        %666 = vmatpush1.msra.mxu0 %v665
        %667 = vmatprep.subr.mxu0 0.0
        %v668 = vand.u32 %v198, 4294901760
        %v669 = vsub.f32 %v198, %v668
        %670 = vmatpush1.msra.mxu0 %v669
        %v671 = vand.u32 %v166, 4294901760
        %v672 = vsub.f32 %v166, %v671
        %673 = vmatprep.mubr.f32.mxu0 %v672
        %v674 = vand.u32 %v165, 4294901760
        %v675 = vsub.f32 %v165, %v674
        %676 = vmatmul.mubr.f32.gmra.mrb[0].mxu0 %v675
        %v677 = vpop.f32.mrb[0].mxu0
        %v678 = vadd.f32 %v540, %v677
        %v679 = vpop.f32.mrb[0].mxu0
        %680 = vdwg.mxu0
        %681 = vmatprep.subr.mxu0 0.0
        %v682 = vand.u32 %v167, 4294901760
        %683 = vmatpush1.msra.mxu0 %v682
        %684 = vmatprep.subr.mxu0 0.0
        %v685 = vand.u32 %v168, 4294901760
        %686 = vmatpush1.msra.mxu0 %v685
        %687 = vmatprep.subr.mxu0 0.0
        %v688 = vand.u32 %v169, 4294901760
        %689 = vmatpush1.msra.mxu0 %v688
        %690 = vmatprep.subr.mxu0 0.0
        %v691 = vand.u32 %v170, 4294901760
        %692 = vmatpush1.msra.mxu0 %v691
        %693 = vmatprep.subr.mxu0 0.0
        %v694 = vand.u32 %v171, 4294901760
        %695 = vmatpush1.msra.mxu0 %v694
        %696 = vmatprep.subr.mxu0 0.0
        %v697 = vand.u32 %v172, 4294901760
        %698 = vmatpush1.msra.mxu0 %v697
        %699 = vmatprep.subr.mxu0 0.0
        %v700 = vand.u32 %v173, 4294901760
        %701 = vmatpush1.msra.mxu0 %v700
        %702 = vmatprep.subr.mxu0 0.0
        %v703 = vand.u32 %v174, 4294901760
        %704 = vmatpush1.msra.mxu0 %v703
        %705 = vmatprep.subr.mxu0 0.0
        %v706 = vand.u32 %v175, 4294901760
        %707 = vmatpush1.msra.mxu0 %v706
        %708 = vmatprep.subr.mxu0 0.0
        %v709 = vand.u32 %v176, 4294901760
        %710 = vmatpush1.msra.mxu0 %v709
        %711 = vmatprep.subr.mxu0 0.0
        %v712 = vand.u32 %v177, 4294901760
        %713 = vmatpush1.msra.mxu0 %v712
        %714 = vmatprep.subr.mxu0 0.0
        %v715 = vand.u32 %v178, 4294901760
        %716 = vmatpush1.msra.mxu0 %v715
        %717 = vmatprep.subr.mxu0 0.0
        %v718 = vand.u32 %v179, 4294901760
        %719 = vmatpush1.msra.mxu0 %v718
        %720 = vmatprep.subr.mxu0 0.0
        %v721 = vand.u32 %v180, 4294901760
        %722 = vmatpush1.msra.mxu0 %v721
        %723 = vmatprep.subr.mxu0 0.0
        %v724 = vand.u32 %v181, 4294901760
        %725 = vmatpush1.msra.mxu0 %v724
        %726 = vmatprep.subr.mxu0 0.0
        %v727 = vand.u32 %v182, 4294901760
        %728 = vmatpush1.msra.mxu0 %v727
        %729 = vmatprep.subr.mxu0 0.0
        %v730 = vand.u32 %v183, 4294901760
        %731 = vmatpush1.msra.mxu0 %v730
        %732 = vmatprep.subr.mxu0 0.0
        %v733 = vand.u32 %v184, 4294901760
        %734 = vmatpush1.msra.mxu0 %v733
        %735 = vmatprep.subr.mxu0 0.0
        %v736 = vand.u32 %v185, 4294901760
        %737 = vmatpush1.msra.mxu0 %v736
        %738 = vmatprep.subr.mxu0 0.0
        %v739 = vand.u32 %v186, 4294901760
        %740 = vmatpush1.msra.mxu0 %v739
        %741 = vmatprep.subr.mxu0 0.0
        %v742 = vand.u32 %v187, 4294901760
        %743 = vmatpush1.msra.mxu0 %v742
        %744 = vmatprep.subr.mxu0 0.0
        %v745 = vand.u32 %v188, 4294901760
        %746 = vmatpush1.msra.mxu0 %v745
        %747 = vmatprep.subr.mxu0 0.0
        %v748 = vand.u32 %v189, 4294901760
        %749 = vmatpush1.msra.mxu0 %v748
        %750 = vmatprep.subr.mxu0 0.0
        %v751 = vand.u32 %v190, 4294901760
        %752 = vmatpush1.msra.mxu0 %v751
        %753 = vmatprep.subr.mxu0 0.0
        %v754 = vand.u32 %v191, 4294901760
        %755 = vmatpush1.msra.mxu0 %v754
        %756 = vmatprep.subr.mxu0 0.0
        %v757 = vand.u32 %v192, 4294901760
        %758 = vmatpush1.msra.mxu0 %v757
        %759 = vmatprep.subr.mxu0 0.0
        %v760 = vand.u32 %v193, 4294901760
        %761 = vmatpush1.msra.mxu0 %v760
        %762 = vmatprep.subr.mxu0 0.0
        %v763 = vand.u32 %v194, 4294901760
        %764 = vmatpush1.msra.mxu0 %v763
        %765 = vmatprep.subr.mxu0 0.0
        %v766 = vand.u32 %v195, 4294901760
        %767 = vmatpush1.msra.mxu0 %v766
        %768 = vmatprep.subr.mxu0 0.0
        %v769 = vand.u32 %v196, 4294901760
        %770 = vmatpush1.msra.mxu0 %v769
        %771 = vmatprep.subr.mxu0 0.0
        %v772 = vand.u32 %v197, 4294901760
        %773 = vmatpush1.msra.mxu0 %v772
        %774 = vmatprep.subr.mxu0 0.0
        %v775 = vand.u32 %v198, 4294901760
        %776 = vmatpush1.msra.mxu0 %v775
        %v777 = vand.u32 %v166, 4294901760
        %v778 = vsub.f32 %v166, %v777
        %v779 = vand.u32 %v778, 4294901760
        %780 = vmatprep.mubr.f32.mxu0 %v779
        %v781 = vand.u32 %v165, 4294901760
        %v782 = vsub.f32 %v165, %v781
        %v783 = vand.u32 %v782, 4294901760
        %784 = vmatmul.mubr.f32.gmra.mrb[0].mxu0 %v783
        %v785 = vpop.f32.mrb[0].mxu0
        %v786 = vadd.f32 %v678, %v785
        %v787 = vpop.f32.mrb[0].mxu0
        %788 = vdwg.mxu0
        %789 = vmatprep.subr.mxu0 0.0
        %v790 = vand.u32 %v167, 4294901760
        %v791 = vsub.f32 %v167, %v790
        %v792 = vand.u32 %v791, 4294901760
        %793 = vmatpush1.msra.mxu0 %v792
        %794 = vmatprep.subr.mxu0 0.0
        %v795 = vand.u32 %v168, 4294901760
        %v796 = vsub.f32 %v168, %v795
        %v797 = vand.u32 %v796, 4294901760
        %798 = vmatpush1.msra.mxu0 %v797
        %799 = vmatprep.subr.mxu0 0.0
        %v800 = vand.u32 %v169, 4294901760
        %v801 = vsub.f32 %v169, %v800
        %v802 = vand.u32 %v801, 4294901760
        %803 = vmatpush1.msra.mxu0 %v802
        %804 = vmatprep.subr.mxu0 0.0
        %v805 = vand.u32 %v170, 4294901760
        %v806 = vsub.f32 %v170, %v805
        %v807 = vand.u32 %v806, 4294901760
        %808 = vmatpush1.msra.mxu0 %v807
        %809 = vmatprep.subr.mxu0 0.0
        %v810 = vand.u32 %v171, 4294901760
        %v811 = vsub.f32 %v171, %v810
        %v812 = vand.u32 %v811, 4294901760
        %813 = vmatpush1.msra.mxu0 %v812
        %814 = vmatprep.subr.mxu0 0.0
        %v815 = vand.u32 %v172, 4294901760
        %v816 = vsub.f32 %v172, %v815
        %v817 = vand.u32 %v816, 4294901760
        %818 = vmatpush1.msra.mxu0 %v817
        %819 = vmatprep.subr.mxu0 0.0
        %v820 = vand.u32 %v173, 4294901760
        %v821 = vsub.f32 %v173, %v820
        %v822 = vand.u32 %v821, 4294901760
        %823 = vmatpush1.msra.mxu0 %v822
        %824 = vmatprep.subr.mxu0 0.0
        %v825 = vand.u32 %v174, 4294901760
        %v826 = vsub.f32 %v174, %v825
        %v827 = vand.u32 %v826, 4294901760
        %828 = vmatpush1.msra.mxu0 %v827
        %829 = vmatprep.subr.mxu0 0.0
        %v830 = vand.u32 %v175, 4294901760
        %v831 = vsub.f32 %v175, %v830
        %v832 = vand.u32 %v831, 4294901760
        %833 = vmatpush1.msra.mxu0 %v832
        %834 = vmatprep.subr.mxu0 0.0
        %v835 = vand.u32 %v176, 4294901760
        %v836 = vsub.f32 %v176, %v835
        %v837 = vand.u32 %v836, 4294901760
        %838 = vmatpush1.msra.mxu0 %v837
        %839 = vmatprep.subr.mxu0 0.0
        %v840 = vand.u32 %v177, 4294901760
        %v841 = vsub.f32 %v177, %v840
        %v842 = vand.u32 %v841, 4294901760
        %843 = vmatpush1.msra.mxu0 %v842
        %844 = vmatprep.subr.mxu0 0.0
        %v845 = vand.u32 %v178, 4294901760
        %v846 = vsub.f32 %v178, %v845
        %v847 = vand.u32 %v846, 4294901760
        %848 = vmatpush1.msra.mxu0 %v847
        %849 = vmatprep.subr.mxu0 0.0
        %v850 = vand.u32 %v179, 4294901760
        %v851 = vsub.f32 %v179, %v850
        %v852 = vand.u32 %v851, 4294901760
        %853 = vmatpush1.msra.mxu0 %v852
        %854 = vmatprep.subr.mxu0 0.0
        %v855 = vand.u32 %v180, 4294901760
        %v856 = vsub.f32 %v180, %v855
        %v857 = vand.u32 %v856, 4294901760
        %858 = vmatpush1.msra.mxu0 %v857
        %859 = vmatprep.subr.mxu0 0.0
        %v860 = vand.u32 %v181, 4294901760
        %v861 = vsub.f32 %v181, %v860
        %v862 = vand.u32 %v861, 4294901760
        %863 = vmatpush1.msra.mxu0 %v862
        %864 = vmatprep.subr.mxu0 0.0
        %v865 = vand.u32 %v182, 4294901760
        %v866 = vsub.f32 %v182, %v865
        %v867 = vand.u32 %v866, 4294901760
        %868 = vmatpush1.msra.mxu0 %v867
        %869 = vmatprep.subr.mxu0 0.0
        %v870 = vand.u32 %v183, 4294901760
        %v871 = vsub.f32 %v183, %v870
        %v872 = vand.u32 %v871, 4294901760
        %873 = vmatpush1.msra.mxu0 %v872
        %874 = vmatprep.subr.mxu0 0.0
        %v875 = vand.u32 %v184, 4294901760
        %v876 = vsub.f32 %v184, %v875
        %v877 = vand.u32 %v876, 4294901760
        %878 = vmatpush1.msra.mxu0 %v877
        %879 = vmatprep.subr.mxu0 0.0
        %v880 = vand.u32 %v185, 4294901760
        %v881 = vsub.f32 %v185, %v880
        %v882 = vand.u32 %v881, 4294901760
        %883 = vmatpush1.msra.mxu0 %v882
        %884 = vmatprep.subr.mxu0 0.0
        %v885 = vand.u32 %v186, 4294901760
        %v886 = vsub.f32 %v186, %v885
        %v887 = vand.u32 %v886, 4294901760
        %888 = vmatpush1.msra.mxu0 %v887
        %889 = vmatprep.subr.mxu0 0.0
        %v890 = vand.u32 %v187, 4294901760
        %v891 = vsub.f32 %v187, %v890
        %v892 = vand.u32 %v891, 4294901760
        %893 = vmatpush1.msra.mxu0 %v892
        %894 = vmatprep.subr.mxu0 0.0
        %v895 = vand.u32 %v188, 4294901760
        %v896 = vsub.f32 %v188, %v895
        %v897 = vand.u32 %v896, 4294901760
        %898 = vmatpush1.msra.mxu0 %v897
        %899 = vmatprep.subr.mxu0 0.0
        %v900 = vand.u32 %v189, 4294901760
        %v901 = vsub.f32 %v189, %v900
        %v902 = vand.u32 %v901, 4294901760
        %903 = vmatpush1.msra.mxu0 %v902
        %904 = vmatprep.subr.mxu0 0.0
        %v905 = vand.u32 %v190, 4294901760
        %v906 = vsub.f32 %v190, %v905
        %v907 = vand.u32 %v906, 4294901760
        %908 = vmatpush1.msra.mxu0 %v907
        %909 = vmatprep.subr.mxu0 0.0
        %v910 = vand.u32 %v191, 4294901760
        %v911 = vsub.f32 %v191, %v910
        %v912 = vand.u32 %v911, 4294901760
        %913 = vmatpush1.msra.mxu0 %v912
        %914 = vmatprep.subr.mxu0 0.0
        %v915 = vand.u32 %v192, 4294901760
        %v916 = vsub.f32 %v192, %v915
        %v917 = vand.u32 %v916, 4294901760
        %918 = vmatpush1.msra.mxu0 %v917
        %919 = vmatprep.subr.mxu0 0.0
        %v920 = vand.u32 %v193, 4294901760
        %v921 = vsub.f32 %v193, %v920
        %v922 = vand.u32 %v921, 4294901760
        %923 = vmatpush1.msra.mxu0 %v922
        %924 = vmatprep.subr.mxu0 0.0
        %v925 = vand.u32 %v194, 4294901760
        %v926 = vsub.f32 %v194, %v925
        %v927 = vand.u32 %v926, 4294901760
        %928 = vmatpush1.msra.mxu0 %v927
        %929 = vmatprep.subr.mxu0 0.0
        %v930 = vand.u32 %v195, 4294901760
        %v931 = vsub.f32 %v195, %v930
        %v932 = vand.u32 %v931, 4294901760
        %933 = vmatpush1.msra.mxu0 %v932
        %934 = vmatprep.subr.mxu0 0.0
        %v935 = vand.u32 %v196, 4294901760
        %v936 = vsub.f32 %v196, %v935
        %v937 = vand.u32 %v936, 4294901760
        %938 = vmatpush1.msra.mxu0 %v937
        %939 = vmatprep.subr.mxu0 0.0
        %v940 = vand.u32 %v197, 4294901760
        %v941 = vsub.f32 %v197, %v940
        %v942 = vand.u32 %v941, 4294901760
        %943 = vmatpush1.msra.mxu0 %v942
        %944 = vmatprep.subr.mxu0 0.0
        %v945 = vand.u32 %v198, 4294901760
        %v946 = vsub.f32 %v198, %v945
        %v947 = vand.u32 %v946, 4294901760
        %948 = vmatpush1.msra.mxu0 %v947
        %v949 = vand.u32 %v166, 4294901760
        %950 = vmatprep.mubr.f32.mxu0 %v949
        %v951 = vand.u32 %v165, 4294901760
        %952 = vmatmul.mubr.f32.gmra.mrb[0].mxu0 %v951
        %v953 = vpop.f32.mrb[0].mxu0
        %v954 = vadd.f32 %v786, %v953
        %v955 = vpop.f32.mrb[0].mxu0
        %956 = vdwg.mxu0
        %957 = vmatprep.subr.mxu0 0.0
        %v958 = vand.u32 %v167, 4294901760
        %959 = vmatpush1.msra.mxu0 %v958
        %960 = vmatprep.subr.mxu0 0.0
        %v961 = vand.u32 %v168, 4294901760
        %962 = vmatpush1.msra.mxu0 %v961
        %963 = vmatprep.subr.mxu0 0.0
        %v964 = vand.u32 %v169, 4294901760
        %965 = vmatpush1.msra.mxu0 %v964
        %966 = vmatprep.subr.mxu0 0.0
        %v967 = vand.u32 %v170, 4294901760
        %968 = vmatpush1.msra.mxu0 %v967
        %969 = vmatprep.subr.mxu0 0.0
        %v970 = vand.u32 %v171, 4294901760
        %971 = vmatpush1.msra.mxu0 %v970
        %972 = vmatprep.subr.mxu0 0.0
        %v973 = vand.u32 %v172, 4294901760
        %974 = vmatpush1.msra.mxu0 %v973
        %975 = vmatprep.subr.mxu0 0.0
        %v976 = vand.u32 %v173, 4294901760
        %977 = vmatpush1.msra.mxu0 %v976
        %978 = vmatprep.subr.mxu0 0.0
        %v979 = vand.u32 %v174, 4294901760
        %980 = vmatpush1.msra.mxu0 %v979
        %981 = vmatprep.subr.mxu0 0.0
        %v982 = vand.u32 %v175, 4294901760
        %983 = vmatpush1.msra.mxu0 %v982
        %984 = vmatprep.subr.mxu0 0.0
        %v985 = vand.u32 %v176, 4294901760
        %986 = vmatpush1.msra.mxu0 %v985
        %987 = vmatprep.subr.mxu0 0.0
        %v988 = vand.u32 %v177, 4294901760
        %989 = vmatpush1.msra.mxu0 %v988
        %990 = vmatprep.subr.mxu0 0.0
        %v991 = vand.u32 %v178, 4294901760
        %992 = vmatpush1.msra.mxu0 %v991
        %993 = vmatprep.subr.mxu0 0.0
        %v994 = vand.u32 %v179, 4294901760
        %995 = vmatpush1.msra.mxu0 %v994
        %996 = vmatprep.subr.mxu0 0.0
        %v997 = vand.u32 %v180, 4294901760
        %998 = vmatpush1.msra.mxu0 %v997
        %999 = vmatprep.subr.mxu0 0.0
        %v1000 = vand.u32 %v181, 4294901760
        %1001 = vmatpush1.msra.mxu0 %v1000
        %1002 = vmatprep.subr.mxu0 0.0
        %v1003 = vand.u32 %v182, 4294901760
        %1004 = vmatpush1.msra.mxu0 %v1003
        %1005 = vmatprep.subr.mxu0 0.0
        %v1006 = vand.u32 %v183, 4294901760
        %1007 = vmatpush1.msra.mxu0 %v1006
        %1008 = vmatprep.subr.mxu0 0.0
        %v1009 = vand.u32 %v184, 4294901760
        %1010 = vmatpush1.msra.mxu0 %v1009
        %1011 = vmatprep.subr.mxu0 0.0
        %v1012 = vand.u32 %v185, 4294901760
        %1013 = vmatpush1.msra.mxu0 %v1012
        %1014 = vmatprep.subr.mxu0 0.0
        %v1015 = vand.u32 %v186, 4294901760
        %1016 = vmatpush1.msra.mxu0 %v1015
        %1017 = vmatprep.subr.mxu0 0.0
        %v1018 = vand.u32 %v187, 4294901760
        %1019 = vmatpush1.msra.mxu0 %v1018
        %1020 = vmatprep.subr.mxu0 0.0
        %v1021 = vand.u32 %v188, 4294901760
        %1022 = vmatpush1.msra.mxu0 %v1021
        %1023 = vmatprep.subr.mxu0 0.0
        %v1024 = vand.u32 %v189, 4294901760
        %1025 = vmatpush1.msra.mxu0 %v1024
        %1026 = vmatprep.subr.mxu0 0.0
        %v1027 = vand.u32 %v190, 4294901760
        %1028 = vmatpush1.msra.mxu0 %v1027
        %1029 = vmatprep.subr.mxu0 0.0
        %v1030 = vand.u32 %v191, 4294901760
        %1031 = vmatpush1.msra.mxu0 %v1030
        %1032 = vmatprep.subr.mxu0 0.0
        %v1033 = vand.u32 %v192, 4294901760
        %1034 = vmatpush1.msra.mxu0 %v1033
        %1035 = vmatprep.subr.mxu0 0.0
        %v1036 = vand.u32 %v193, 4294901760
        %1037 = vmatpush1.msra.mxu0 %v1036
        %1038 = vmatprep.subr.mxu0 0.0
        %v1039 = vand.u32 %v194, 4294901760
        %1040 = vmatpush1.msra.mxu0 %v1039
        %1041 = vmatprep.subr.mxu0 0.0
        %v1042 = vand.u32 %v195, 4294901760
        %1043 = vmatpush1.msra.mxu0 %v1042
        %1044 = vmatprep.subr.mxu0 0.0
        %v1045 = vand.u32 %v196, 4294901760
        %1046 = vmatpush1.msra.mxu0 %v1045
        %1047 = vmatprep.subr.mxu0 0.0
        %v1048 = vand.u32 %v197, 4294901760
        %1049 = vmatpush1.msra.mxu0 %v1048
        %1050 = vmatprep.subr.mxu0 0.0
        %v1051 = vand.u32 %v198, 4294901760
        %1052 = vmatpush1.msra.mxu0 %v1051
        %v1053 = vand.u32 %v166, 4294901760
        %1054 = vmatprep.mubr.f32.mxu0 %v1053
        %v1055 = vand.u32 %v165, 4294901760
        %1056 = vmatmul.mubr.f32.gmra.mrb[0].mxu0 %v1055
        %v1057 = vpop.f32.mrb[0].mxu0
        %v1058 = vadd.f32 %v954, %v1057
        %v1059 = vpop.f32.mrb[0].mxu0
        %1060 = vdwg.mxu0
        %v1061 = vmul.f32 %v1058, 11.313708
        %1062 = vst [vmem:[%s149] sm:$0xff] %v1061
        %s1063 = sand.u32 %s72, 1
        %s1064 = scalar_lea.sflag [#allocation4], %s1063
        %s1065 = sand.u32 %s72, 1
        %s1066 = smul.addr %s1065, 8
        %s1067 = scalar_lea.vmem [#allocation5], %s1066
        // Predicated region
        $region33: #{tpu_custom_call.1} parent=27 // pred_check
          %p1068 = pneg %p82
        $region34: #{tpu_custom_call.1} parent=27 // pred_check_branch
          %1070 = sbr.rel (%p1068) target = $region36
        $region35: #{tpu_custom_call.1} parent=27 // pred_region
          %s1072 = ssub.s32 128, 128
          %1073 = vsyncadd %s1064, %s1072
          %s1074 = smul.addr %s17, 128
          %s1075 = scalar_lea.hbm %s2, %s1074
          %s1077 = sshll.u32 %s1067, 4
          %s1078 = int_to_ptr.vmem [resolvable:$true] %s1077
          %1080 = dma.vmem_to_hbm [thread:$0]  %s1078, 128, %s1075, %s1064
        $region36: #{tpu_custom_call.1} parent=27 // pred_fallthru
          _
      $region28: #{tpu_custom_call.1} parent=5 // pred_fallthru
        _
      %p1081 = scmp.le.s32.totalorder 2, %s12
      // Predicated region
      $region37: #{tpu_custom_call.1} parent=5 // pred_check
        %p1082 = pneg %p1081
      $region38: #{tpu_custom_call.1} parent=5 // pred_check_branch
        %1084 = sbr.rel (%p1082) target = $region40
      $region39: #{tpu_custom_call.1} parent=5 // pred_region
        %s1085 = ssub.s32 %s12, 2
        // Predicated region
        $region41: #{tpu_custom_call.1} parent=39 // pred_check
          %p1086 = pneg %p88
        $region42: #{tpu_custom_call.1} parent=39 // pred_check_branch
          %1088 = sbr.rel (%p1086) target = $region44
        $region43: #{tpu_custom_call.1} parent=39 // pred_region
          %s1089 = sand.u32 %s73, 1
          %s1090 = scalar_lea.sflag [#allocation4], %s1089
          %s1091 = sand.u32 %s73, 1
          %s1092 = smul.addr %s1091, 8
          %s1093 = scalar_lea.vmem [#allocation5], %s1092
          %1094 = dma.done %s1090, 128
        $region44: #{tpu_custom_call.1} parent=39 // pred_fallthru
          _
      $region40: #{tpu_custom_call.1} parent=5 // pred_fallthru
        _
    $region6: #{tpu_custom_call.1} parent=1 // loop_footer
      %s16 = sadd.s32 1, %s12
    $region7: #{tpu_custom_call.1} parent=1 // loop_footer_branch
      %11 = sbr.rel target = $region3
    $region8: #{tpu_custom_call.1} parent=1 // loop_exit
      _
    %1095 = vsyncpa [#allocation3], 1
    %s1096 = scalar_lea.sflag [#allocation3], 1
    %1097 = vsyncpa %s1096, 1
    %1098 = vsyncpa [#allocation4], 1
    %s1099 = scalar_lea.sflag [#allocation4], 1
    %1100 = vsyncpa %s1099, 1

</llo_original>
